<compile_context>
chip_gen: v7x
topology: tpu7x:2x2x1
jax: 0.10.0
libtpu: 0.0.40
codegen_flags: <defaults>
</compile_context>

<pallas_src>
import math
import functools

import jax
import jax.numpy as jnp
from jax.experimental import pallas as pl
from jax.experimental.pallas import tpu as pltpu


# ------------------------------- small helpers --------------------------------

def _round_up(x, m):
    return ((x + m - 1) // m) * m


def _full_spec(arr):
    # whole array as a single block, independent of the grid index
    return pl.BlockSpec(arr.shape, lambda *_, n=arr.ndim: (0,) * n)


# ----------------------------- in-kernel helpers -------------------------------

def _layernorm(x, g, b, eps=1e-5):
    # torch.nn.LayerNorm: biased variance, eps inside rsqrt (f32 math)
    mu = jnp.mean(x, axis=-1, keepdims=True)
    var = jnp.mean((x - mu) ** 2, axis=-1, keepdims=True)
    return (x - mu) * jax.lax.rsqrt(var + eps) * g + b


def _gelu_exact(x):
    # torch.nn.GELU() default (exact, erf-based), f32
    return 0.5 * x * (1.0 + jax.lax.erf(x * (1.0 / math.sqrt(2.0))))


# ---------------------------------- kernels ------------------------------------

def linear_kernel(x_ref, w_ref, b_ref, o_ref):
    # x, w are bf16; accumulate in f32
    o_ref[...] = (
        jnp.dot(x_ref[...], w_ref[...], preferred_element_type=jnp.float32)
        + b_ref[...]
    )


def head_kernel(x_ref, w1_ref, b1_ref, w2_ref, b2_ref, o_ref):
    h = jnp.dot(x_ref[...].astype(jnp.bfloat16), w1_ref[...],
                preferred_element_type=jnp.float32) + b1_ref[...]
    h = jnp.tanh(h)
    o_ref[...] = jnp.dot(h.astype(jnp.bfloat16), w2_ref[...],
                         preferred_element_type=jnp.float32) + b2_ref[...]


def encoder_kernel(x_ref, wqkv_ref, wo_ref, w1_ref, w2_ref, vecs_ref, b1_ref,
                   out_ref, *, n_blocks, n_heads, s_real):
    x = x_ref[0]                                   # (S_pad, D) f32
    S_pad, D = x.shape
    dk = D // n_heads
    scale = 1.0 / math.sqrt(dk)

    # Key-padding mask (True = real key column). Hoisted once; reused by every
    # block / head (JAX does not CSE broadcasts inside unrolled loops).
    key_mask = jax.lax.broadcasted_iota(jnp.int32, (S_pad, S_pad), 1) < s_real

    for bi in range(n_blocks):                     # all encoder blocks fused
        vec = vecs_ref[bi]                         # (9, D) f32 packed vectors
        ln1g, ln1b = vec[0:1], vec[1:2]
        bq, bk, bv, bo = vec[2:3], vec[3:4], vec[4:5], vec[5:6]
        ln2g, ln2b, b2 = vec[6:7], vec[7:8], vec[8:9]
        b1 = b1_ref[bi:bi + 1]                     # (1, Dff) f32

        # ---- multi-head self-attention with pre-LayerNorm ----
        xn = _layernorm(x, ln1g, ln1b)
        xnb = xn.astype(jnp.bfloat16)
        q = jnp.dot(xnb, wqkv_ref[3 * bi + 0],
                    preferred_element_type=jnp.float32) + bq
        k = jnp.dot(xnb, wqkv_ref[3 * bi + 1],
                    preferred_element_type=jnp.float32) + bk
        v = jnp.dot(xnb, wqkv_ref[3 * bi + 2],
                    preferred_element_type=jnp.float32) + bv
        qb = (q * scale).astype(jnp.bfloat16)      # fold 1/sqrt(dk) into q once
        kb = k.astype(jnp.bfloat16)
        vb = v.astype(jnp.bfloat16)

        attn = jnp.zeros((S_pad, D), jnp.float32)
        for h in range(n_heads):                   # static unroll over heads
            sl = slice(h * dk, (h + 1) * dk)
            # contract last dims of q_h and k_h: no explicit k.T materialized
            s = jax.lax.dot_general(qb[:, sl], kb[:, sl],
                                    (((1,), (1,)), ((), ())),
                                    preferred_element_type=jnp.float32)
            s = jnp.where(key_mask, s, -1e30)      # mask padded key positions
            m = jnp.max(s, axis=-1, keepdims=True)
            p = jnp.exp(s - m)
            denom = jnp.sum(p, axis=-1, keepdims=True)
            o_h = jnp.dot(p.astype(jnp.bfloat16), vb[:, sl],
                          preferred_element_type=jnp.float32)
            # normalize the (S, dk) output instead of the (S, S) prob tile; EUP recip
            o_h = o_h * pl.reciprocal(denom, approx=True)
            # accumulate this head's contribution through its wo slice (no concat)
            attn = attn + jnp.dot(o_h.astype(jnp.bfloat16),
                                  wo_ref[bi * n_heads + h],
                                  preferred_element_type=jnp.float32)
        x = x + attn + bo                          # residual (dropout = identity)

        # ---- position-wise FFN with pre-LayerNorm ----
        xn2 = _layernorm(x, ln2g, ln2b)
        h1 = jnp.dot(xn2.astype(jnp.bfloat16), w1_ref[bi],
                     preferred_element_type=jnp.float32) + b1
        h1 = _gelu_exact(h1)
        h2 = jnp.dot(h1.astype(jnp.bfloat16), w2_ref[bi],
                     preferred_element_type=jnp.float32) + b2
        x = x + h2                                 # residual

    out_ref[0] = x


# --------------------------------- wrappers -------------------------------------

def pallas_linear(x_bf16, w_bf16, b_f32, tile_m=256):
    """y = x @ w + b, tiled over rows of x with a parallel grid."""
    M, K = x_bf16.shape
    N = w_bf16.shape[1]
    tm = min(tile_m, _round_up(M, 8))
    Mp = _round_up(M, tm)
    if Mp != M:
        x_bf16 = jnp.pad(x_bf16, ((0, Mp - M), (0, 0)))
    y = pl.pallas_call(
        linear_kernel,
        out_shape=jax.ShapeDtypeStruct((Mp, N), jnp.float32),
        grid=(Mp // tm,),
        in_specs=[pl.BlockSpec((tm, K), lambda i: (i, 0)),
                  _full_spec(w_bf16), _full_spec(b_f32)],
        out_specs=pl.BlockSpec((tm, N), lambda i: (i, 0)),
        compiler_params=pltpu.CompilerParams(
            dimension_semantics=("parallel",)),
    )(x_bf16, w_bf16, b_f32)
    return y[:M]


def patch_embed(x, conv_w, conv_b, cls_tok, pos_enc, patch_size):
    # Conv2d(k=stride=p)  ==  per-patch matmul with flattened (c, kh, kw) kernel.
    B, C, H, W = x.shape
    p = patch_size
    hp, wp = H // p, W // p
    E = conv_w.shape[0]
    patches = (
        x.reshape(B, C, hp, p, wp, p)
        .transpose(0, 2, 4, 1, 3, 5)                  # (B, hp, wp, C, p, p)
        .reshape(B * hp * wp, C * p * p)
    )
    w_flat = conv_w.reshape(E, C * p * p).T           # (C*p*p, E)
    y = pallas_linear(patches.astype(jnp.bfloat16),
                      w_flat.astype(jnp.bfloat16),
                      conv_b.reshape(1, E))
    tokens = y.reshape(B, hp * wp, E)
    cls = jnp.broadcast_to(cls_tok, (B, 1, E))
    tokens = jnp.concatenate([cls, tokens], axis=1)   # class token first
    tokens = tokens + pos_enc                         # (1, S, E) broadcast
    return tokens                                     # dropout_rate=0.0 -> identity


def pack_params(params, n_heads):
    """Stack per-block weights; cast matmul weights to bf16; pack small vectors."""
    blocks = params["blocks"]
    D = blocks[0]["wq"].shape[0]
    dk = D // n_heads
    vecs = jnp.stack([
        jnp.stack([b["ln1g"], b["ln1b"], b["bq"], b["bk"], b["bv"], b["bo"],
                   b["ln2g"], b["ln2b"], b["b2"]]) for b in blocks
    ]).astype(jnp.float32)                                         # (nb, 9, D)
    return {
        "vecs": vecs,
        "b1": jnp.stack([b["b1"] for b in blocks]).astype(jnp.float32),   # (nb, Dff)
        "wqkv": jnp.concatenate(
            [jnp.stack([b["wq"], b["wk"], b["wv"]]) for b in blocks],
            axis=0).astype(jnp.bfloat16),                          # (3*nb, D, D)
        "wo": jnp.concatenate(
            [b["wo"].reshape(n_heads, dk, D) for b in blocks],
            axis=0).astype(jnp.bfloat16),                          # (nb*nh, dk, D)
        "w1": jnp.stack([b["w1"] for b in blocks]).astype(jnp.bfloat16),  # (nb, D, Dff)
        "w2": jnp.stack([b["w2"] for b in blocks]).astype(jnp.bfloat16),  # (nb, Dff, D)
    }


def encoder_forward(tokens, packed, *, n_blocks, n_heads, s_real):
    B, S_pad, D = tokens.shape
    kern = functools.partial(encoder_kernel, n_blocks=n_blocks,
                             n_heads=n_heads, s_real=s_real)
    args = [tokens, packed["wqkv"], packed["wo"], packed["w1"],
            packed["w2"], packed["vecs"], packed["b1"]]
    in_specs = [pl.BlockSpec((1, S_pad, D), lambda b: (b, 0, 0))]
    in_specs += [_full_spec(a) for a in args[1:]]
    return pl.pallas_call(
        kern,
        out_shape=jax.ShapeDtypeStruct((B, S_pad, D), jnp.float32),
        grid=(B,),
        in_specs=in_specs,
        out_specs=pl.BlockSpec((1, S_pad, D), lambda b: (b, 0, 0)),
        compiler_params=pltpu.CompilerParams(
            dimension_semantics=("parallel",),          # feeds both v7x TCs when B>1
            vmem_limit_bytes=32 * 1024 * 1024,
        ),
    )(*args)


def classification_head(cls_tok, w1, b1, w2, b2):
    B, _ = cls_tok.shape
    N = w2.shape[1]
    return pl.pallas_call(
        head_kernel,
        out_shape=jax.ShapeDtypeStruct((B, N), jnp.float32),
        grid=(1,),
        in_specs=[_full_spec(cls_tok), _full_spec(w1), _full_spec(b1),
                  _full_spec(w2), _full_spec(b2)],
        out_specs=pl.BlockSpec((B, N), lambda i: (0, 0)),
    )(cls_tok, w1, b1, w2, b2)


def transformer_forward(x, params, *, patch_size, n_heads):
    tokens = patch_embed(x, params["conv_w"], params["conv_b"],
                         params["cls"], params["pos"], patch_size)
    B, S, D = tokens.shape
    S_pad = _round_up(S, 16)                          # bf16 sublane multiple
    if S_pad != S:
        tokens = jnp.pad(tokens, ((0, 0), (0, S_pad - S), (0, 0)))
    packed = pack_params(params, n_heads)
    n_blocks = len(params["blocks"])
    tokens = encoder_forward(tokens, packed, n_blocks=n_blocks,
                             n_heads=n_heads, s_real=S)
    cls_tok = tokens[:, 0, :]
    return classification_head(
        cls_tok,
        params["head_w1"].astype(jnp.bfloat16), params["head_b1"].reshape(1, -1),
        params["head_w2"].astype(jnp.bfloat16), params["head_b2"].reshape(1, -1))


# ------------------------------- parameter init ---------------------------------

def _trunc_normal(key, shape, std=0.02):
    return (std * jax.random.truncated_normal(key, -2.0, 2.0, shape)).astype(jnp.float32)


def init_params(key, img_side_len, patch_size, n_channels, num_classes,
                n_heads, n_blocks, embed_dim, ffn_multiplier):
    D, Dff = embed_dim, embed_dim * ffn_multiplier
    num_patches = (img_side_len // patch_size) ** 2 + 1   # includes class token
    keys = iter(jax.random.split(key, 8 + 6 * n_blocks))

    params = {
        "conv_w": _trunc_normal(next(keys), (D, n_channels, patch_size, patch_size)),
        "conv_b": jnp.zeros((D,), jnp.float32),
        "pos":    _trunc_normal(next(keys), (1, num_patches, D)),
        "cls":    _trunc_normal(next(keys), (1, 1, D)),
        "head_w1": _trunc_normal(next(keys), (D, D)),
        "head_b1": jnp.zeros((D,), jnp.float32),
        "head_w2": _trunc_normal(next(keys), (D, num_classes)),
        "head_b2": jnp.zeros((num_classes,), jnp.float32),
        "blocks": [],
    }
    for _ in range(n_blocks):
        bp = {
            "ln1g": jnp.ones((D,), jnp.float32), "ln1b": jnp.zeros((D,), jnp.float32),
            "wq": _trunc_normal(next(keys), (D, D)), "bq": jnp.zeros((D,), jnp.float32),
            "wk": _trunc_normal(next(keys), (D, D)), "bk": jnp.zeros((D,), jnp.float32),
            "wv": _trunc_normal(next(keys), (D, D)), "bv": jnp.zeros((D,), jnp.float32),
            "wo": _trunc_normal(next(keys), (D, D)), "bo": jnp.zeros((D,), jnp.float32),
            "ln2g": jnp.ones((D,), jnp.float32), "ln2b": jnp.zeros((D,), jnp.float32),
            "w1": _trunc_normal(next(keys), (D, Dff)), "b1": jnp.zeros((Dff,), jnp.float32),
            "w2": _trunc_normal(next(keys), (Dff, D)), "b2": jnp.zeros((D,), jnp.float32),
        }
        params["blocks"].append(bp)
    return params


# ------------------------------------ main ---------------------------------------

if __name__ == "__main__":
    # small, forward-consistent shapes
    B, C, H = 2, 4, 16
    patch_size = 4
    num_classes = 10
    n_heads = 4
    n_blocks = 2
    embed_dim = 32
    ffn_multiplier = 4

    key = jax.random.PRNGKey(0)
    kx, kp = jax.random.split(key)
    x = jax.random.normal(kx, (B, C, H, H), dtype=jnp.float32)

    params = init_params(kp, H, patch_size, C, num_classes,
                         n_heads, n_blocks, embed_dim, ffn_multiplier)

    out = transformer_forward(x, params, patch_size=patch_size, n_heads=n_heads)
    out = jax.block_until_ready(out)
    assert out.shape == (B, num_classes), out.shape
    assert bool(jnp.all(jnp.isfinite(out)))
    print("KERNEL_OK")
</pallas_src>

<mosaic_0001>
module attributes {stable_mosaic.version = 11 : i64} {
  func.func @linear_kernel(%arg0: i32, %arg1: memref<32x64xbf16, #tpu.memory_space<vmem>>, %arg2: memref<64x32xbf16, #tpu.memory_space<vmem>>, %arg3: memref<1x32xf32, #tpu.memory_space<vmem>>, %arg4: memref<32x32xf32, #tpu.memory_space<vmem>>) attributes {dimension_semantics = [#tpu.dimension_semantics<parallel>], iteration_bounds = array<i64: 1>, scalar_prefetch = 0 : i64, scratch_operands = 0 : i64, tpu.core_type = #tpu.core_type<tc>, window_params = [{transform_indices = @transform_0, window_bounds = array<i64: 32, 64>}, {pipeline_mode = #tpu.pipeline_mode<synchronous>, transform_indices = @transform_1, window_bounds = array<i64: 64, 32>}, {pipeline_mode = #tpu.pipeline_mode<synchronous>, transform_indices = @transform_2, window_bounds = array<i64: 1, 32>}, {transform_indices = @transform_3, window_bounds = array<i64: 32, 32>}]} {
    %c0 = arith.constant 0 : index
    %c0_0 = arith.constant 0 : index
    %0 = vector.load %arg1[%c0, %c0_0] : memref<32x64xbf16, #tpu.memory_space<vmem>>, vector<32x64xbf16>
    %c0_1 = arith.constant 0 : index
    %c0_2 = arith.constant 0 : index
    %1 = vector.load %arg2[%c0_1, %c0_2] : memref<64x32xbf16, #tpu.memory_space<vmem>>, vector<64x32xbf16>
    %cst = arith.constant dense<0.000000e+00> : vector<32x32xf32>
    %2 = tpu.matmul %0, %1, %cst {dimension_numbers = #tpu.dot_dimension_numbers<[1], [0], [0], [1], [0, 0, 1, 1], [], []>} : vector<32x64xbf16>, vector<64x32xbf16>, vector<32x32xf32> -> vector<32x32xf32>
    %c0_3 = arith.constant 0 : index
    %c0_4 = arith.constant 0 : index
    %3 = vector.load %arg3[%c0_3, %c0_4] : memref<1x32xf32, #tpu.memory_space<vmem>>, vector<1x32xf32>
    %4 = vector.broadcast %3 : vector<1x32xf32> to vector<32x32xf32>
    %5 = arith.addf %2, %4 : vector<32x32xf32>
    %c0_5 = arith.constant 0 : index
    %c0_6 = arith.constant 0 : index
    %6 = vector.load %arg4[%c0_5, %c0_6] : memref<32x32xf32, #tpu.memory_space<vmem>>, vector<32x32xf32>
    tpu.vector_store %arg4[%c0_5, %c0_6], %5 {strides = array<i32>} : memref<32x32xf32, #tpu.memory_space<vmem>>, vector<32x32xf32>,
    return
  }
  func.func @transform_0(%arg0: i32) -> (i32, i32) {
    %c0_i32 = arith.constant 0 : i32
    %c0_i32_0 = arith.constant 0 : i32
    return %arg0, %c0_i32 : i32, i32
  }
  func.func @transform_1(%arg0: i32) -> (i32, i32) {
    %c0_i32 = arith.constant 0 : i32
    %c0_i32_0 = arith.constant 0 : i32
    %c0_i32_1 = arith.constant 0 : i32
    return %c0_i32, %c0_i32_0 : i32, i32
  }
  func.func @transform_2(%arg0: i32) -> (i32, i32) {
    %c0_i32 = arith.constant 0 : i32
    %c0_i32_0 = arith.constant 0 : i32
    %c0_i32_1 = arith.constant 0 : i32
    return %c0_i32, %c0_i32_0 : i32, i32
  }
  func.func @transform_3(%arg0: i32) -> (i32, i32) {
    %c0_i32 = arith.constant 0 : i32
    %c0_i32_0 = arith.constant 0 : i32
    return %arg0, %c0_i32 : i32, i32
  }
}

</mosaic_0001>

<llo_original>
// kernel: tpu_custom_call.1
$region0: #{tpu_custom_call.1}
  #allocation0 [shape = 'u32[]', space=smem, size = 0x4, offset = 0x4, fixed_abs, tag = 'smem constant byte address 0x4 - core index']
  #allocation1 [shape = 'u32[144,128]{1,0:T(1,128)}', space=vmem, size = 0x12000, scoped, tag = 'internal scratch']
  %s0 = inlined_call_operand.vmem [shape: bf16[32,64], index: 0, kind: input, shape index: {}]
  %s1 = inlined_call_operand.vmem [shape: bf16[64,32], index: 1, kind: input, shape index: {}]
  %s2 = inlined_call_operand.vmem [shape: f32[1,32], index: 2, kind: input, shape index: {}]
  %s3 = inlined_call_operand.hbm [shape: f32[32,32], index: 3, kind: output, shape index: {}]
  %s4 = sld [smem:[#allocation0]]
  $region22: #{tpu_custom_call.1} parent=0
    _
  %s6 = ssub.s32 1, %s4
  %s7 = scalar_select 0, %s6, %s4
  $region1: #{tpu_custom_call.1} parent=0
    #allocation2 [shape = 'u8[16384]{0}', space=vmem, size = 0x4000, scoped, tag = 'output window, operand 0, single buffered']
    #allocation3 [shape = 's32[1]{0}', space=sflag, size = 0x4, scoped, tag = 'scoped memory for tpu_custom_call.1']
    %8 = vsyncpa [#allocation3], 0
    // Predicated region
    $region2: #{tpu_custom_call.1} parent=1 // pred_check
      _
    $region3: #{tpu_custom_call.1} parent=1 // pred_check_branch
      %10 = sbr.rel (0) target = $region5
    $region4: #{tpu_custom_call.1} parent=1 // pred_region
      _
    $region5: #{tpu_custom_call.1} parent=1 // pred_fallthru
      _
    // Predicated region
    $region6: #{tpu_custom_call.1} parent=1 // pred_check
      _
    $region7: #{tpu_custom_call.1} parent=1 // pred_check_branch
      %12 = sbr.rel (0) target = $region9
    $region8: #{tpu_custom_call.1} parent=1 // pred_region
      _
    $region9: #{tpu_custom_call.1} parent=1 // pred_fallthru
      _
    // Predicated region
    $region10: #{tpu_custom_call.1} parent=1 // pred_check
      _
    $region11: #{tpu_custom_call.1} parent=1 // pred_check_branch
      %14 = sbr.rel (0) target = $region13
    $region12: #{tpu_custom_call.1} parent=1 // pred_region
      _
    $region13: #{tpu_custom_call.1} parent=1 // pred_fallthru
      _
    %v16 = vld [vmem:[%s0] sm:$0xf]
    %v17 = vld [vmem:[%s0 + $0x4] sm:$0xf]
    %v18 = vld [vmem:[%s0 + $0x8] sm:$0xf]
    %v19 = vld [vmem:[%s0 + $0xc] sm:$0xf]
    %v20 = vld [vmem:[%s1] sm:$0xf]
    %v21 = vld [vmem:[%s1 + $0x4] sm:$0xf]
    %v22 = vld [vmem:[%s1 + $0x8] sm:$0xf]
    %v23 = vld [vmem:[%s1 + $0xc] sm:$0xf]
    %v24 = vld [vmem:[%s1 + $0x10] sm:$0xf]
    %v25 = vld [vmem:[%s1 + $0x14] sm:$0xf]
    %v26 = vld [vmem:[%s1 + $0x18] sm:$0xf]
    %v27 = vld [vmem:[%s1 + $0x1c] sm:$0xf]
    %v28 = vld [vmem:[%s2] sm:$0x1]
    %v30 = vlaneseq
    %v31 = vshrl.u32 %v30, 7
    %v32 = vsub.s32 0, %v31
    %v33 = vrot.slane %v28, %v32
    %v39 = vunpack.c.l.b16 %v16
    %v40 = vunpack.c.l.b16 %v17
    %v41 = vunpack.c.l.b16 %v18
    %v42 = vunpack.c.l.b16 %v19
    %v43 = vpack.c.b16 %v40, %v39
    %v44 = vpack.c.b16 %v42, %v41
    %v53 = vunpack.c.l.b16 %v20
    %v54 = vunpack.c.l.b16 %v21
    %v55 = vunpack.c.l.b16 %v22
    %v56 = vunpack.c.l.b16 %v23
    %v57 = vunpack.c.l.b16 %v24
    %v58 = vunpack.c.l.b16 %v25
    %v59 = vunpack.c.l.b16 %v26
    %v60 = vunpack.c.l.b16 %v27
    %v61 = vpack.c.b16 %v54, %v53
    %v62 = vpack.c.b16 %v56, %v55
    %v63 = vpack.c.b16 %v58, %v57
    %v64 = vpack.c.b16 %v60, %v59
    %vm69 = vcmask 523264
    %v71 = vsel %vm69, %v43, 0
    %v74 = vsel %vm69, %v44, 0
    %76 = vmatprep.subr.bf16.mxu0 0
    %77 = vmatpush1.bf16.msra.mxu0 %v61
    %78 = vmatprep.subr.bf16.mxu0 0
    %79 = vmatpush1.bf16.msra.mxu0 %v62
    %80 = vmatprep.subr.bf16.mxu0 0
    %81 = vmatpush1.bf16.msra.mxu0 %v63
    %82 = vmatprep.subr.bf16.mxu0 0
    %83 = vmatpush1.bf16.msra.mxu0 %v64
    %84 = vmatprep.subr.bf16.mxu0 0
    %85 = vmatpush1.bf16.msra.mxu0 0
    %86 = vmatprep.subr.bf16.mxu0 0
    %87 = vmatpush1.bf16.msra.mxu0 0
    %88 = vmatprep.subr.bf16.mxu0 0
    %89 = vmatpush1.bf16.msra.mxu0 0
    %90 = vmatprep.subr.bf16.mxu0 0
    %91 = vmatpush1.bf16.msra.mxu0 0
    %92 = vmatprep.subr.bf16.mxu0 0
    %93 = vmatpush1.bf16.msra.mxu0 0
    %94 = vmatprep.subr.bf16.mxu0 0
    %95 = vmatpush1.bf16.msra.mxu0 0
    %96 = vmatprep.subr.bf16.mxu0 0
    %97 = vmatpush1.bf16.msra.mxu0 0
    %98 = vmatprep.subr.bf16.mxu0 0
    %99 = vmatpush1.bf16.msra.mxu0 0
    %100 = vmatprep.subr.bf16.mxu0 0
    %101 = vmatpush1.bf16.msra.mxu0 0
    %102 = vmatprep.subr.bf16.mxu0 0
    %103 = vmatpush1.bf16.msra.mxu0 0
    %104 = vmatprep.subr.bf16.mxu0 0
    %105 = vmatpush1.bf16.msra.mxu0 0
    %106 = vmatprep.subr.bf16.mxu0 0
    %107 = vmatpush1.bf16.msra.mxu0 0
    %108 = vmatprep.mubr.bf16.mxu0 0
    %109 = vmatmul.mubr.bf16.gmra.mrb[0].mxu0 %v71
    %v110 = vpop.f32.mrb[0].mxu0
    %v111 = vadd.f32 %v33, %v110
    %v112 = vpop.f32.mrb[0].mxu0
    %v113 = vpop.f32.mrb[0].mxu0
    %v114 = vadd.f32 %v33, %v113
    %v115 = vpop.f32.mrb[0].mxu0
    %116 = vmatprep.mubr.bf16.mxu0 0
    %117 = vmatmul.mubr.bf16.gmra.mrb[0].mxu0 %v74
    %v118 = vpop.f32.mrb[0].mxu0
    %v119 = vadd.f32 %v33, %v118
    %v120 = vpop.f32.mrb[0].mxu0
    %v121 = vpop.f32.mrb[0].mxu0
    %v122 = vadd.f32 %v33, %v121
    %v123 = vpop.f32.mrb[0].mxu0
    %124 = vdwg.mxu0
    %vm125 = vcmask 261120
    %126 = vst.msk [vmem:[#allocation2] sm:$0xff] %vm125, %v111
    %127 = vst.msk [vmem:[#allocation2 + $0x8] sm:$0xff] %vm125, %v114
    %128 = vst.msk [vmem:[#allocation2 + $0x10] sm:$0xff] %vm125, %v119
    %129 = vst.msk [vmem:[#allocation2 + $0x18] sm:$0xff] %vm125, %v122
    // Predicated region
    $region14: #{tpu_custom_call.1} parent=1 // pred_check
      _
    $region15: #{tpu_custom_call.1} parent=1 // pred_check_branch
      %131 = sbr.rel (0) target = $region17
    $region16: #{tpu_custom_call.1} parent=1 // pred_region
      %s133 = ssub.s32 512, 512
      %134 = vsyncadd [#allocation3], %s133
      %s135 = sshll.u32 [#allocation2], 4
      %s136 = int_to_ptr.vmem [resolvable:$true] %s135
      %141 = dma.vmem_to_hbm [thread:$0]  %s136, 512, %s3, [#allocation3], 128, 128, 8
    $region17: #{tpu_custom_call.1} parent=1 // pred_fallthru
      _
    // Predicated region
    $region18: #{tpu_custom_call.1} parent=1 // pred_check
      _
    $region19: #{tpu_custom_call.1} parent=1 // pred_check_branch
      %143 = sbr.rel (0) target = $region21
    $region20: #{tpu_custom_call.1} parent=1 // pred_region
      %144 = dma.done [#allocation3], 512
    $region21: #{tpu_custom_call.1} parent=1 // pred_fallthru
      _
    %145 = vsyncpa [#allocation3], 1

</llo_original>
